<compile_context>
chip_gen: v7x
topology: tpu7x:2x2x1
jax: 0.10.0
libtpu: 0.0.40
codegen_flags: <defaults>
</compile_context>

<pallas_src>
import functools

import jax
import jax.numpy as jnp
from jax import lax
from jax.experimental import pallas as pl
from jax.experimental.pallas import tpu as pltpu

EPS = 1e-5  # PyTorch GroupNorm default eps


# --------------------------------------------------------------------------- #
# pltpu.roll rotation-direction probe (makes the im2col shifts robust to the
# rotation convention of the underlying rotate op).
# --------------------------------------------------------------------------- #
@functools.lru_cache(maxsize=None)
def _roll_is_jnp_convention() -> bool:
    def probe(x_ref, o_ref):
        o_ref[...] = pltpu.roll(x_ref[...], shift=1, axis=1)

    x = lax.broadcasted_iota(jnp.float32, (8, 128), 1)
    r = pl.pallas_call(probe, out_shape=jax.ShapeDtypeStruct((8, 128), jnp.float32))(x)
    # jnp.roll convention: result[j] == x[j - 1]  ->  r[0, 1] == 0
    return bool(r[0, 1] == 0.0)


# --------------------------------------------------------------------------- #
# Kernel
# --------------------------------------------------------------------------- #
def _make_kernel(H, W, C_in, C_out, has_shortcut, roll_like_jnp):
    HW = H * W
    f32 = jnp.float32
    bf16 = jnp.bfloat16
    taps = [(k // 3 - 1, k % 3 - 1) for k in range(9)]  # (oy, ox), row-major

    def shifted(a, oy, ox):
        off = oy * W + ox
        if off == 0:
            return a
        shift = (-off) % HW if roll_like_jnp else off % HW
        return pltpu.roll(a, shift=shift, axis=1)

    def group_norm_swish(a, p_ref, gamma, beta):
        # a: (C, HW) f32.  p_ref: (C, C) group-averaging matrix (1/(cg*HW) within group).
        s1 = jnp.sum(a, axis=1, keepdims=True)                          # (C, 1)
        mean = jnp.dot(p_ref[...], s1, preferred_element_type=f32)      # group mean / channel
        d = a - mean
        s2 = jnp.sum(d * d, axis=1, keepdims=True)                      # (C, 1)
        var = jnp.dot(p_ref[...], s2, preferred_element_type=f32)       # biased group var
        y = d * lax.rsqrt(var + EPS) * gamma + beta
        return y * jax.nn.sigmoid(y)                                    # Swish

    def conv3x3(a, C, w_ref, col_ref, m_ref):
        # a: (C, HW) f32 -> one MXU matmul (C_out, 9C) x (9C, HW), bf16 operands.
        ab = a.astype(bf16)
        for k, (oy, ox) in enumerate(taps):
            tk = shifted(ab, oy, ox)
            if (oy, ox) != (0, 0):
                mi = k if k < 4 else k - 1
                tk = tk * m_ref[mi:mi + 1, :]            # (1, HW) bf16 border mask
            col_ref[k * C:(k + 1) * C, :] = tk           # write tap block into scratch
        return jnp.dot(w_ref[...], col_ref[0:9 * C, :], preferred_element_type=f32)

    def kernel(x_ref, t_ref, m_ref, p1_ref, c1_ref, w1_ref, tw_ref,
               p2_ref, c2_ref, w2_ref, *rest):
        if has_shortcut:
            sw_ref, o_ref, col_ref = rest
        else:
            o_ref, col_ref = rest

        x16 = x_ref[0]                                   # (C_in, HW) bf16
        x = x16.astype(f32)

        # --- norm1 + Swish + conv1 (single im2col matmul) --------------------
        a1 = group_norm_swish(x, p1_ref, c1_ref[:, 0:1], c1_ref[:, 1:2])
        # time embedding Linear(Swish(t)) as a (C_out, 1) column; conv1 bias and
        # time_emb bias are pre-summed into c2_ref[:, 0].
        t = t_ref[...].astype(f32)                       # (1, Tc)
        st = t * jax.nn.sigmoid(t)
        emb = jnp.sum(tw_ref[...] * st, axis=1, keepdims=True) + c2_ref[:, 0:1]
        h = conv3x3(a1, C_in, w1_ref, col_ref, m_ref) + emb

        # --- norm2 + Swish + conv2 + residual ---------------------------------
        # TODO(synk): nn.Dropout(p=0.1) is identity in eval mode; train-mode dropout
        # (pltpu.prng_random_bits mask) is not implemented.
        a2 = group_norm_swish(h, p2_ref, c2_ref[:, 1:2], c2_ref[:, 2:3])

        bias_res = c2_ref[:, 3:4]                        # conv2_b (+ shortcut_b) pre-summed
        if has_shortcut:
            res = jnp.dot(sw_ref[...], x16, preferred_element_type=f32) + bias_res
        else:
            res = x + bias_res                           # nn.Identity shortcut
        out = conv3x3(a2, C_out, w2_ref, col_ref, m_ref) + res
        o_ref[0] = out.astype(o_ref.dtype)

    return kernel


# --------------------------------------------------------------------------- #
# Wrapper
# --------------------------------------------------------------------------- #
def _const_spec(a, single_buffer):
    zeros = (0,) * a.ndim
    idx = lambda b, _z=zeros: _z
    if single_buffer and hasattr(pl, "Buffered"):
        try:
            # Grid-invariant operand: double-buffering is pure VMEM waste.
            return pl.BlockSpec(a.shape, idx, pipeline_mode=pl.Buffered(1))
        except TypeError:
            pass
    return pl.BlockSpec(a.shape, idx)


def residual_block_forward(x_nchw, t, params, n_groups):
    """Fused ResidualBlock forward. x_nchw: (B, C_in, H, W); t: (B, Tc)."""
    B, C_in, H, W = x_nchw.shape
    C_out = params["conv1_w"].shape[0]
    Tc = t.shape[1]
    HW = H * W
    has_shortcut = "shortcut_w" in params
    if not has_shortcut:
        assert C_in == C_out, "nn.Identity shortcut requires C_in == C_out"

    f32 = jnp.float32
    bf16 = jnp.bfloat16
    col = lambda v: v.astype(f32).reshape(-1, 1)

    # NCHW -> (B, C, H*W): contiguous reshape; activations cross HBM in bf16.
    x = x_nchw.reshape(B, C_in, HW).astype(bf16)

    def group_avg(C):
        cg = C // n_groups
        same = (jnp.arange(C)[:, None] // cg) == (jnp.arange(C)[None, :] // cg)
        return same.astype(f32) / float(cg * HW)

    # 3x3 border-validity masks, one row per non-center tap (tap order row-major).
    pos = jnp.arange(HW)
    prow, pcol = pos // W, pos % W
    mask_rows = []
    for k in range(9):
        oy, ox = k // 3 - 1, k % 3 - 1
        if oy == 0 and ox == 0:
            continue
        ok = ((prow + oy >= 0) & (prow + oy < H) & (pcol + ox >= 0) & (pcol + ox < W))
        mask_rows.append(ok)
    masks = jnp.stack(mask_rows, axis=0).astype(bf16)            # (8, HW)

    # conv weights OIHW -> (C_out, 9*C_in), columns ordered (dy, dx, c); bf16 for MXU.
    w1f = jnp.transpose(params["conv1_w"], (0, 2, 3, 1)).reshape(C_out, 9 * C_in).astype(bf16)
    w2f = jnp.transpose(params["conv2_w"], (0, 2, 3, 1)).reshape(C_out, 9 * C_out).astype(bf16)

    # Packed per-channel columns (avoids 8 separate lane-padded (C,1) operands).
    cin_cols = jnp.concatenate([col(params["norm1_w"]), col(params["norm1_b"])], axis=1)
    bias1 = col(params["conv1_b"]) + col(params["time_b"])       # conv1 bias + time_emb bias
    bias_res = col(params["conv2_b"])
    if has_shortcut:
        bias_res = bias_res + col(params["shortcut_b"])          # fold shortcut bias in
    cout_cols = jnp.concatenate(
        [bias1, col(params["norm2_w"]), col(params["norm2_b"]), bias_res], axis=1)

    args = [
        x, t,
        masks,
        group_avg(C_in), cin_cols, w1f,
        params["time_w"].astype(f32),
        group_avg(C_out), cout_cols, w2f,
    ]
    if has_shortcut:
        args.append(params["shortcut_w"].reshape(C_out, C_in).astype(bf16))

    kern = _make_kernel(H, W, C_in, C_out, has_shortcut, _roll_is_jnp_convention())
    c_max = max(C_in, C_out)

    # TODO(synk): at production DDPM sizes (e.g. 64x64 spatial x 512 channels) add an
    # H-tile grid axis with a 1-row halo and an explicit vmem_limit_bytes (v7x has
    # 64 MiB VMEM, v5e a 16 MiB default scoped window); the whole-image-per-grid-step
    # tiling below is sized for small feature maps.
    def call(single_buffer_consts):
        in_specs = ([pl.BlockSpec((1, C_in, HW), lambda b: (b, 0, 0)),
                     pl.BlockSpec((1, Tc), lambda b: (b, 0))]
                    + [_const_spec(a, single_buffer_consts) for a in args[2:]])
        return pl.pallas_call(
            kern,
            out_shape=jax.ShapeDtypeStruct((B, C_out, HW), bf16),
            grid_spec=pltpu.PrefetchScalarGridSpec(
                num_scalar_prefetch=0,
                grid=(B,),
                in_specs=in_specs,
                out_specs=pl.BlockSpec((1, C_out, HW), lambda b: (b, 0, 0)),
                scratch_shapes=[pltpu.VMEM((9 * c_max, HW), bf16)],  # shared im2col buffer
            ),
            compiler_params=pltpu.CompilerParams(dimension_semantics=("parallel",)),
        )(*args)

    try:
        out = call(True)
    except Exception:
        # Fallback in case pipeline_mode=pl.Buffered(1) is unsupported by this jax build.
        out = call(False)

    return out.reshape(B, C_out, H, W)


# ----------------------------- pure-JAX reference -----------------------------
def ref_forward(x, t, params, n_groups):
    def gn(v, w, b, G):
        B, C, H, W = v.shape
        v5 = v.reshape(B, G, C // G, H, W)
        m = v5.mean(axis=(2, 3, 4), keepdims=True)
        var = v5.var(axis=(2, 3, 4), keepdims=True)
        vn = ((v5 - m) / jnp.sqrt(var + EPS)).reshape(B, C, H, W)
        return vn * w[None, :, None, None] + b[None, :, None, None]

    def swish(v):
        return v * jax.nn.sigmoid(v)

    def conv3(v, w, b):
        y = lax.conv_general_dilated(v, w, (1, 1), ((1, 1), (1, 1)),
                                     dimension_numbers=("NCHW", "OIHW", "NCHW"))
        return y + b[None, :, None, None]

    h = conv3(swish(gn(x, params["norm1_w"], params["norm1_b"], n_groups)),
              params["conv1_w"], params["conv1_b"])
    emb = swish(t) @ params["time_w"].T + params["time_b"]
    h = h + emb[:, :, None, None]
    h = conv3(swish(gn(h, params["norm2_w"], params["norm2_b"], n_groups)),
              params["conv2_w"], params["conv2_b"])
    if "shortcut_w" in params:
        sc = lax.conv_general_dilated(x, params["shortcut_w"], (1, 1), ((0, 0), (0, 0)),
                                      dimension_numbers=("NCHW", "OIHW", "NCHW"))
        sc = sc + params["shortcut_b"][None, :, None, None]
    else:
        sc = x
    return h + sc


# ----------------------------- demo / self-check -----------------------------
def _make_params(key, C_in, C_out, Tc, with_shortcut):
    ks = jax.random.split(key, 12)
    p = {
        "norm1_w": 1.0 + 0.1 * jax.random.normal(ks[0], (C_in,), jnp.float32),
        "norm1_b": 0.1 * jax.random.normal(ks[1], (C_in,), jnp.float32),
        "conv1_w": 0.1 * jax.random.normal(ks[2], (C_out, C_in, 3, 3), jnp.float32),
        "conv1_b": 0.1 * jax.random.normal(ks[3], (C_out,), jnp.float32),
        "norm2_w": 1.0 + 0.1 * jax.random.normal(ks[4], (C_out,), jnp.float32),
        "norm2_b": 0.1 * jax.random.normal(ks[5], (C_out,), jnp.float32),
        "conv2_w": 0.1 * jax.random.normal(ks[6], (C_out, C_out, 3, 3), jnp.float32),
        "conv2_b": 0.1 * jax.random.normal(ks[7], (C_out,), jnp.float32),
        "time_w": 0.1 * jax.random.normal(ks[8], (C_out, Tc), jnp.float32),
        "time_b": 0.1 * jax.random.normal(ks[9], (C_out,), jnp.float32),
    }
    if with_shortcut:
        p["shortcut_w"] = 0.1 * jax.random.normal(ks[10], (C_out, C_in, 1, 1), jnp.float32)
        p["shortcut_b"] = 0.1 * jax.random.normal(ks[11], (C_out,), jnp.float32)
    return p


def _run_case(key, B, C_in, C_out, Tc, H, W, n_groups, with_shortcut):
    kp, kx, kt = jax.random.split(key, 3)
    params = _make_params(kp, C_in, C_out, Tc, with_shortcut)
    x = jax.random.normal(kx, (B, C_in, H, W), jnp.float32)
    t = jax.random.normal(kt, (B, Tc), jnp.float32)

    # Activations cross HBM in bf16 (perf); reference sees the same quantized input.
    x_bf16 = x.astype(jnp.bfloat16)
    out = jax.block_until_ready(residual_block_forward(x_bf16, t, params, n_groups))
    out = out.astype(jnp.float32)
    ref = ref_forward(x_bf16.astype(jnp.float32), t, params, n_groups)

    assert out.shape == (B, C_out, H, W), out.shape
    err = float(jnp.max(jnp.abs(out - ref)))
    # Tolerance accounts for bf16 MXU operands + bf16 output (f32 accumulation).
    assert jnp.allclose(out, ref, atol=8e-2, rtol=3e-2), err


if __name__ == "__main__":
    # 1x1-conv shortcut path (in_channels != out_channels)
    _run_case(jax.random.PRNGKey(0), B=2, C_in=16, C_out=32, Tc=8, H=16, W=16,
              n_groups=4, with_shortcut=True)
    # nn.Identity shortcut path (in_channels == out_channels): no 1x1 matmul compiled in
    _run_case(jax.random.PRNGKey(0), B=2, C_in=16, C_out=16, Tc=8, H=16, W=16,
              n_groups=4, with_shortcut=False)
    print("KERNEL_OK")
</pallas_src>

<mosaic_0001>
module attributes {stable_mosaic.version = 11 : i64} {
  func.func @probe(%arg0: memref<8x128xf32, #tpu.memory_space<vmem>>, %arg1: memref<8x128xf32, #tpu.memory_space<vmem>>) attributes {dimension_semantics = [], scalar_prefetch = 0 : i64, scratch_operands = 0 : i64, tpu.core_type = #tpu.core_type<tc>} {
    %c0 = arith.constant 0 : index
    %c0_0 = arith.constant 0 : index
    %0 = vector.load %arg0[%c0, %c0_0] : memref<8x128xf32, #tpu.memory_space<vmem>>, vector<8x128xf32>
    %c1_i32 = arith.constant 1 : i32
    %1 = tpu.dynamic_rotate %0 by %c1_i32 dim 1 : vector<8x128xf32>, i32 -> vector<8x128xf32>
    %c0_1 = arith.constant 0 : index
    %c0_2 = arith.constant 0 : index
    %2 = vector.load %arg1[%c0_1, %c0_2] : memref<8x128xf32, #tpu.memory_space<vmem>>, vector<8x128xf32>
    tpu.vector_store %arg1[%c0_1, %c0_2], %1 {strides = array<i32>} : memref<8x128xf32, #tpu.memory_space<vmem>>, vector<8x128xf32>,
    return
  }
}

</mosaic_0001>

<llo_original>
// kernel: tpu_custom_call.1
$region0: #{tpu_custom_call.1}
  #allocation0 [shape = 'u32[]', space=smem, size = 0x4, offset = 0x4, fixed_abs, tag = 'smem constant byte address 0x4 - core index']
  #allocation1 [shape = 'u32[144,128]{1,0:T(1,128)}', space=vmem, size = 0x12000, scoped, tag = 'internal scratch']
  %s0 = inlined_call_operand.hbm [shape: f32[8,128], index: 0, kind: input, shape index: {}]
  %s1 = inlined_call_operand.hbm [shape: f32[8,128], index: 1, kind: output, shape index: {}]
  %s2 = sld [smem:[#allocation0]]
  $region18: #{tpu_custom_call.1} parent=0
    _
  %s4 = ssub.s32 1, %s2
  %s5 = scalar_select 0, %s4, %s2
  $region1: #{tpu_custom_call.1} parent=0
    #allocation2 [shape = 'u8[4096]{0}', space=vmem, size = 0x1000, scoped, tag = 'input window, operand 0, single buffered']
    #allocation3 [shape = 's32[1]{0}', space=sflag, size = 0x4, scoped, tag = 'scoped memory for tpu_custom_call.1']
    #allocation4 [shape = 's32[1]{0}', space=sflag, size = 0x4, scoped, tag = 'scoped memory for tpu_custom_call.1']
    #allocation5 [shape = 'u8[4096]{0}', space=vmem, size = 0x1000, scoped, tag = 'output window, operand 0, single buffered']
    %6 = vsyncpa [#allocation3], 0
    %7 = vsyncpa [#allocation4], 0
    // Predicated region
    $region2: #{tpu_custom_call.1} parent=1 // pred_check
      _
    $region3: #{tpu_custom_call.1} parent=1 // pred_check_branch
      %9 = sbr.rel (0) target = $region5
    $region4: #{tpu_custom_call.1} parent=1 // pred_region
      %s11 = ssub.s32 128, 128
      %12 = vsyncadd [#allocation3], %s11
      %s14 = sshll.u32 [#allocation2], 4
      %s15 = int_to_ptr.vmem [resolvable:$true] %s14
      %17 = dma.hbm_to_vmem [thread:$0]  %s0, 128, %s15, [#allocation3]
    $region5: #{tpu_custom_call.1} parent=1 // pred_fallthru
      _
    // Predicated region
    $region6: #{tpu_custom_call.1} parent=1 // pred_check
      _
    $region7: #{tpu_custom_call.1} parent=1 // pred_check_branch
      %19 = sbr.rel (0) target = $region9
    $region8: #{tpu_custom_call.1} parent=1 // pred_region
      %20 = dma.done [#allocation3], 128
    $region9: #{tpu_custom_call.1} parent=1 // pred_fallthru
      _
    %v21 = vld [vmem:[#allocation2] sm:$0xff]
    %22 = vrot.lane.b32.xlu0 %v21, 1
    %v23 = vpop.permute.xlu0 %22
    %24 = vst [vmem:[#allocation5] sm:$0xff] %v23
    // Predicated region
    $region10: #{tpu_custom_call.1} parent=1 // pred_check
      _
    $region11: #{tpu_custom_call.1} parent=1 // pred_check_branch
      %26 = sbr.rel (0) target = $region13
    $region12: #{tpu_custom_call.1} parent=1 // pred_region
      %s28 = ssub.s32 128, 128
      %29 = vsyncadd [#allocation4], %s28
      %s31 = sshll.u32 [#allocation5], 4
      %s32 = int_to_ptr.vmem [resolvable:$true] %s31
      %34 = dma.vmem_to_hbm [thread:$0]  %s32, 128, %s1, [#allocation4]
    $region13: #{tpu_custom_call.1} parent=1 // pred_fallthru
      _
    // Predicated region
    $region14: #{tpu_custom_call.1} parent=1 // pred_check
      _
    $region15: #{tpu_custom_call.1} parent=1 // pred_check_branch
      %36 = sbr.rel (0) target = $region17
    $region16: #{tpu_custom_call.1} parent=1 // pred_region
      %37 = dma.done [#allocation4], 128
    $region17: #{tpu_custom_call.1} parent=1 // pred_fallthru
      _
    %38 = vsyncpa [#allocation3], 1
    %39 = vsyncpa [#allocation4], 1

</llo_original>
